<compile_context>
chip_gen: v7x
topology: tpu7x:2x2x1
jax: 0.10.0
libtpu: 0.0.40
codegen_flags: <defaults>
</compile_context>

<pallas_src>
import jax
import jax.numpy as jnp
from jax.experimental import pallas as pl
from jax.experimental.pallas import tpu as pltpu

ALPHA = 0.25
GAMMA = 2.0              # module default; gamma == 2 lets the kernel use x*x (VPU)
_BLOCK_BYTES = 2 << 20   # ~2 MiB per stream per buffer (12 MiB double-buffered)


# --------------------------------------------------------------------------- #
# Kernels
# --------------------------------------------------------------------------- #
def _focal_loss_kernel_exact(pred_ref, target_ref, out_ref):
    """Literal transcription of the PyTorch forward (gamma=2 -> plain square)."""
    pred = pred_ref[...]
    target = target_ref[...]

    is_pos = target == 1.0
    alpha_factor = jnp.where(is_pos, ALPHA, 1.0 - ALPHA)

    fw = jnp.where(is_pos, 1.0 - pred, pred)
    focal_weight = alpha_factor * (fw * fw)          # pow(x,2) -> VPU, not EUP

    binary_ce = -(target * jnp.log(pred) + (1.0 - target) * jnp.log(1.0 - pred))
    out_ref[...] = focal_weight * binary_ce


def _focal_loss_kernel_hard(pred_ref, target_ref, out_ref):
    """Opt-in fast path for hard {0,1} targets: BCE collapses to -log(pt).

    Differs from the reference only for soft labels, or at pred exactly 0/1 with
    a matching target (returns 0 where the reference returns 0*(-inf)=NaN).
    """
    pred = pred_ref[...]
    target = target_ref[...]

    is_pos = target == 1.0
    alpha_factor = jnp.where(is_pos, ALPHA, 1.0 - ALPHA)

    pt = jnp.where(is_pos, pred, 1.0 - pred)
    one_minus_pt = 1.0 - pt
    out_ref[...] = alpha_factor * (one_minus_pt * one_minus_pt) * (-jnp.log(pt))


# --------------------------------------------------------------------------- #
# Wrapper
# --------------------------------------------------------------------------- #
def _round_up(x, m):
    return ((x + m - 1) // m) * m


def _pick_lanes(total):
    """Widest lane width that divides `total` (free reshape) with >= 8 rows."""
    candidates = [l for l in (1024, 512, 256, 128) if total % l == 0]
    if not candidates:
        return 128                      # ragged element count: 128 lanes + tail
    for lanes in candidates:
        if total // lanes >= 8:
            return lanes
    return candidates[-1]               # tiny input: narrowest divisor -> most rows


def _choose_grid(rows, rt_req):
    """Pick (rows_per_block, num_blocks) for the single 'parallel' grid axis."""
    if rows < 8:
        # One block whose row dim equals the full array (allowed by the (8,128)
        # rule even when not a multiple of 8).
        return rows, 1
    nblocks = pl.cdiv(rows, rt_req)
    if rows >= 16:
        nblocks = max(nblocks, 2)       # keep both v7x TensorCores busy
    if nblocks > 1 and nblocks % 2:
        nblocks += 1                    # even split across v7x's 2 TCs
    rt = max(8, _round_up(pl.cdiv(rows, nblocks), 8))
    return rt, pl.cdiv(rows, rt)


def _focal_loss_jax(pred, target):
    """Pure-JAX transcription of the PyTorch module (also used for tails)."""
    alpha_factor = jnp.where(target == 1.0, ALPHA, 1.0 - ALPHA)
    focal_weight = jnp.where(target == 1.0, 1.0 - pred, pred)
    focal_weight = alpha_factor * jnp.power(focal_weight, GAMMA)
    binary_ce = -(target * jnp.log(pred) + (1.0 - target) * jnp.log(1.0 - pred))
    return focal_weight * binary_ce


def focal_loss(pred, target, *, block_bytes=_BLOCK_BYTES, assume_hard_targets=False):
    """Elementwise focal loss matching the PyTorch module (no reduction)."""
    assert pred.shape == target.shape, "pred/target shape mismatch"
    orig_shape = pred.shape
    total = pred.size
    if total == 0:
        return jnp.zeros(orig_shape, pred.dtype)

    kernel = _focal_loss_kernel_hard if assume_hard_targets else _focal_loss_kernel_exact

    pred_f = pred.reshape(-1)
    target_f = target.reshape(-1)

    lanes = _pick_lanes(total)
    rows = total // lanes
    main = rows * lanes
    tail = total - main

    pieces = []
    if rows > 0:
        if tail:
            # Rare ragged case: slice off the aligned prefix (one extra pass on
            # the prefix + a final concat), still far cheaper than padding both
            # inputs and slicing the output.
            pred_main = pred_f[:main]
            target_main = target_f[:main]
        else:
            # Common case: reshape is a free bitcast, zero extra HBM traffic.
            pred_main, target_main = pred_f, target_f
        pred2d = pred_main.reshape(rows, lanes)
        target2d = target_main.reshape(rows, lanes)

        itemsize = jnp.dtype(pred.dtype).itemsize
        rt_req = max(8, (block_bytes // (lanes * itemsize)) // 8 * 8)
        rt, nblocks = _choose_grid(rows, rt_req)
        block_actual = rt * lanes * itemsize

        spec = pl.BlockSpec((rt, lanes), lambda i: (i, 0))
        out2d = pl.pallas_call(
            kernel,
            out_shape=jax.ShapeDtypeStruct((rows, lanes), pred.dtype),
            grid_spec=pltpu.PrefetchScalarGridSpec(
                num_scalar_prefetch=0,
                grid=(nblocks,),
                in_specs=[spec, spec],
                out_specs=spec,
            ),
            compiler_params=pltpu.CompilerParams(
                dimension_semantics=("parallel",),
                # 3 streams x 2 buffers x block + headroom; explicit so that the
                # 12 MiB double-buffer fits comfortably even under v5e's 16 MiB
                # default scoped VMEM (well below v7x's 64 MiB physical).
                vmem_limit_bytes=6 * block_actual + (8 << 20),
            ),
        )(pred2d, target2d)
        pieces.append(out2d.reshape(-1))

    if tail:
        # <lane-width remainder: negligible, computed with the exact formula.
        pieces.append(_focal_loss_jax(pred_f[main:], target_f[main:]))

    out_flat = pieces[0] if len(pieces) == 1 else jnp.concatenate(pieces)
    return out_flat.reshape(orig_shape)


# Pure-JAX reference for verification.
focal_loss_ref = _focal_loss_jax


if __name__ == "__main__":
    key = jax.random.PRNGKey(0)
    k_pred, k_tgt = jax.random.split(key)

    B, C, H, W = 2, 4, 16, 16  # NCHW, like the PyTorch conv-style predictions
    # pred must be a probability in (0, 1) for the log terms to be finite.
    pred = jax.nn.sigmoid(jax.random.normal(k_pred, (B, C, H, W), jnp.float32))
    # target is a binary {0,1} map (anchors matched / unmatched).
    target = (jax.random.uniform(k_tgt, (B, C, H, W)) > 0.8).astype(jnp.float32)

    loss = jax.block_until_ready(focal_loss(pred, target))
    ref = focal_loss_ref(pred, target)
    assert loss.shape == (B, C, H, W)
    assert jnp.allclose(loss, ref, atol=1e-5, rtol=1e-5), "exact kernel mismatch"

    # Opt-in single-log fast path (exact for hard binary targets like these).
    loss_hard = jax.block_until_ready(focal_loss(pred, target, assume_hard_targets=True))
    assert jnp.allclose(loss_hard, ref, atol=1e-5, rtol=1e-5), "hard-target kernel mismatch"

    # Ragged (non-128-aligned) shape exercises the prefix + plain-JAX tail path.
    n = 1000
    p2 = jax.nn.sigmoid(jax.random.normal(k_pred, (n,), jnp.float32))
    t2 = (jax.random.uniform(k_tgt, (n,)) > 0.5).astype(jnp.float32)
    l2 = jax.block_until_ready(focal_loss(p2, t2))
    assert jnp.allclose(l2, focal_loss_ref(p2, t2), atol=1e-5, rtol=1e-5), "ragged mismatch"

    print("KERNEL_OK")
</pallas_src>

<mosaic_0001>
module attributes {stable_mosaic.version = 11 : i64} {
  func.func @_focal_loss_kernel_exact(%arg0: i32, %arg1: memref<8x256xf32, #tpu.memory_space<vmem>>, %arg2: memref<8x256xf32, #tpu.memory_space<vmem>>, %arg3: memref<8x256xf32, #tpu.memory_space<vmem>>) attributes {dimension_semantics = [#tpu.dimension_semantics<parallel>], iteration_bounds = array<i64: 1>, scalar_prefetch = 0 : i64, scratch_operands = 0 : i64, tpu.core_type = #tpu.core_type<tc>, window_params = [{transform_indices = @transform_0, window_bounds = array<i64: 8, 256>}, {transform_indices = @transform_1, window_bounds = array<i64: 8, 256>}, {transform_indices = @transform_2, window_bounds = array<i64: 8, 256>}]} {
    %c0 = arith.constant 0 : index
    %c0_0 = arith.constant 0 : index
    %0 = vector.load %arg1[%c0, %c0_0] : memref<8x256xf32, #tpu.memory_space<vmem>>, vector<8x256xf32>
    %c0_1 = arith.constant 0 : index
    %c0_2 = arith.constant 0 : index
    %1 = vector.load %arg2[%c0_1, %c0_2] : memref<8x256xf32, #tpu.memory_space<vmem>>, vector<8x256xf32>
    %cst = arith.constant 1.000000e+00 : f32
    %2 = vector.broadcast %cst : f32 to vector<8x256xf32>
    %3 = arith.cmpf oeq, %1, %2 : vector<8x256xf32>
    %cst_3 = arith.constant 2.500000e-01 : f32
    %cst_4 = arith.constant 7.500000e-01 : f32
    %4 = vector.broadcast %cst_3 : f32 to vector<8x256xf32>
    %5 = vector.broadcast %cst_4 : f32 to vector<8x256xf32>
    %6 = arith.select %3, %4, %5 : vector<8x256xi1>, vector<8x256xf32>
    %cst_5 = arith.constant 1.000000e+00 : f32
    %7 = vector.broadcast %cst_5 : f32 to vector<8x256xf32>
    %8 = arith.subf %7, %0 : vector<8x256xf32>
    %9 = arith.select %3, %8, %0 : vector<8x256xi1>, vector<8x256xf32>
    %10 = arith.mulf %9, %9 : vector<8x256xf32>
    %11 = arith.mulf %6, %10 : vector<8x256xf32>
    %12 = math.log %0 : vector<8x256xf32>
    %13 = arith.mulf %1, %12 : vector<8x256xf32>
    %cst_6 = arith.constant 1.000000e+00 : f32
    %14 = vector.broadcast %cst_6 : f32 to vector<8x256xf32>
    %15 = arith.subf %14, %1 : vector<8x256xf32>
    %cst_7 = arith.constant 1.000000e+00 : f32
    %16 = vector.broadcast %cst_7 : f32 to vector<8x256xf32>
    %17 = arith.subf %16, %0 : vector<8x256xf32>
    %18 = math.log %17 : vector<8x256xf32>
    %19 = arith.mulf %15, %18 : vector<8x256xf32>
    %20 = arith.addf %13, %19 : vector<8x256xf32>
    %cst_8 = arith.constant 0.000000e+00 : f32
    %21 = vector.broadcast %cst_8 : f32 to vector<8x256xf32>
    %22 = arith.subf %21, %20 : vector<8x256xf32>
    %23 = arith.mulf %11, %22 : vector<8x256xf32>
    %c0_9 = arith.constant 0 : index
    %c0_10 = arith.constant 0 : index
    %24 = vector.load %arg3[%c0_9, %c0_10] : memref<8x256xf32, #tpu.memory_space<vmem>>, vector<8x256xf32>
    tpu.vector_store %arg3[%c0_9, %c0_10], %23 {strides = array<i32>} : memref<8x256xf32, #tpu.memory_space<vmem>>, vector<8x256xf32>,
    return
  }
  func.func @transform_0(%arg0: i32) -> (i32, i32) {
    %c0_i32 = arith.constant 0 : i32
    %c0_i32_0 = arith.constant 0 : i32
    return %arg0, %c0_i32 : i32, i32
  }
  func.func @transform_1(%arg0: i32) -> (i32, i32) {
    %c0_i32 = arith.constant 0 : i32
    %c0_i32_0 = arith.constant 0 : i32
    return %arg0, %c0_i32 : i32, i32
  }
  func.func @transform_2(%arg0: i32) -> (i32, i32) {
    %c0_i32 = arith.constant 0 : i32
    %c0_i32_0 = arith.constant 0 : i32
    return %arg0, %c0_i32 : i32, i32
  }
}

</mosaic_0001>

<llo_original>
// kernel: tpu_custom_call.1
$region0: #{tpu_custom_call.1}
  #allocation0 [shape = 'u32[]', space=smem, size = 0x4, offset = 0x4, fixed_abs, tag = 'smem constant byte address 0x4 - core index']
  #allocation1 [shape = 'u32[144,128]{1,0:T(1,128)}', space=vmem, size = 0x12000, scoped, tag = 'internal scratch']
  %s0 = inlined_call_operand.hbm [shape: f32[8,256], index: 0, kind: input, shape index: {}]
  %s1 = inlined_call_operand.hbm [shape: f32[8,256], index: 1, kind: input, shape index: {}]
  %s2 = inlined_call_operand.hbm [shape: f32[8,256], index: 2, kind: output, shape index: {}]
  %s3 = sld [smem:[#allocation0]]
  $region26: #{tpu_custom_call.1} parent=0
    _
  %s5 = ssub.s32 1, %s3
  %s6 = scalar_select 0, %s5, %s3
  $region1: #{tpu_custom_call.1} parent=0
    #allocation2 [shape = 'u8[8192]{0}', space=vmem, size = 0x2000, scoped, tag = 'input window, operand 0, single buffered']
    #allocation3 [shape = 's32[1]{0}', space=sflag, size = 0x4, scoped, tag = 'scoped memory for tpu_custom_call.1']
    #allocation4 [shape = 's32[1]{0}', space=sflag, size = 0x4, scoped, tag = 'scoped memory for tpu_custom_call.1']
    #allocation5 [shape = 'u8[8192]{0}', space=vmem, size = 0x2000, scoped, tag = 'input window, operand 1, single buffered']
    #allocation6 [shape = 's32[1]{0}', space=sflag, size = 0x4, scoped, tag = 'scoped memory for tpu_custom_call.1']
    #allocation7 [shape = 'u8[8192]{0}', space=vmem, size = 0x2000, scoped, tag = 'output window, operand 0, single buffered']
    %7 = vsyncpa [#allocation3], 0
    %8 = vsyncpa [#allocation6], 0
    %9 = vsyncpa [#allocation4], 0
    // Predicated region
    $region2: #{tpu_custom_call.1} parent=1 // pred_check
      _
    $region3: #{tpu_custom_call.1} parent=1 // pred_check_branch
      %11 = sbr.rel (0) target = $region5
    $region4: #{tpu_custom_call.1} parent=1 // pred_region
      %s13 = ssub.s32 256, 256
      %14 = vsyncadd [#allocation3], %s13
      %s16 = sshll.u32 [#allocation2], 4
      %s17 = int_to_ptr.vmem [resolvable:$true] %s16
      %19 = dma.hbm_to_vmem [thread:$0]  %s0, 256, %s17, [#allocation3]
    $region5: #{tpu_custom_call.1} parent=1 // pred_fallthru
      _
    // Predicated region
    $region6: #{tpu_custom_call.1} parent=1 // pred_check
      _
    $region7: #{tpu_custom_call.1} parent=1 // pred_check_branch
      %21 = sbr.rel (0) target = $region9
    $region8: #{tpu_custom_call.1} parent=1 // pred_region
      %s23 = ssub.s32 256, 256
      %24 = vsyncadd [#allocation6], %s23
      %s26 = sshll.u32 [#allocation5], 4
      %s27 = int_to_ptr.vmem [resolvable:$true] %s26
      %29 = dma.hbm_to_vmem [thread:$0]  %s1, 256, %s27, [#allocation6]
    $region9: #{tpu_custom_call.1} parent=1 // pred_fallthru
      _
    // Predicated region
    $region10: #{tpu_custom_call.1} parent=1 // pred_check
      _
    $region11: #{tpu_custom_call.1} parent=1 // pred_check_branch
      %31 = sbr.rel (0) target = $region13
    $region12: #{tpu_custom_call.1} parent=1 // pred_region
      %32 = dma.done [#allocation3], 256
    $region13: #{tpu_custom_call.1} parent=1 // pred_fallthru
      _
    // Predicated region
    $region14: #{tpu_custom_call.1} parent=1 // pred_check
      _
    $region15: #{tpu_custom_call.1} parent=1 // pred_check_branch
      %34 = sbr.rel (0) target = $region17
    $region16: #{tpu_custom_call.1} parent=1 // pred_region
      %35 = dma.done [#allocation6], 256
    $region17: #{tpu_custom_call.1} parent=1 // pred_fallthru
      _
    %v36 = vld [vmem:[#allocation2] sm:$0xff]
    %v37 = vld [vmem:[#allocation2 + $0x8] sm:$0xff]
    %v38 = vld [vmem:[#allocation5] sm:$0xff]
    %v39 = vld [vmem:[#allocation5 + $0x8] sm:$0xff]
    %vm40 = vcmp.eq.f32.partialorder %v38, 1.0
    %vm41 = vcmp.eq.f32.partialorder %v39, 1.0
    %v42 = vsel %vm40, 0.25, 0.75
    %v43 = vsel %vm41, 0.25, 0.75
    %v44 = vsub.f32 1.0, %v36
    %v45 = vsub.f32 1.0, %v37
    %v46 = vsel %vm40, %v44, %v36
    %v47 = vsel %vm41, %v45, %v37
    %v48 = vmul.f32 %v46, %v46
    %v49 = vmul.f32 %v47, %v47
    %v50 = vmul.f32 %v42, %v48
    %v51 = vmul.f32 %v43, %v49
    %v52 = vlog2.pop %v36
    %v53 = vmul.f32 %v52, 0.6931472
    %v54 = vlog2.pop %v37
    %v55 = vmul.f32 %v54, 0.6931472
    %v56 = vmul.f32 %v38, %v53
    %v57 = vmul.f32 %v39, %v55
    %v58 = vsub.f32 1.0, %v38
    %v59 = vsub.f32 1.0, %v39
    %v60 = vlog2.pop %v44
    %v61 = vmul.f32 %v60, 0.6931472
    %v62 = vlog2.pop %v45
    %v63 = vmul.f32 %v62, 0.6931472
    %v64 = vmul.f32 %v58, %v61
    %v65 = vmul.f32 %v59, %v63
    %v66 = vadd.f32 %v56, %v64
    %v67 = vadd.f32 %v57, %v65
    %v68 = vsub.f32 0.0, %v66
    %v69 = vsub.f32 0.0, %v67
    %v70 = vmul.f32 %v50, %v68
    %v71 = vmul.f32 %v51, %v69
    %72 = vst [vmem:[#allocation7] sm:$0xff] %v70
    %73 = vst [vmem:[#allocation7 + $0x8] sm:$0xff] %v71
    // Predicated region
    $region18: #{tpu_custom_call.1} parent=1 // pred_check
      _
    $region19: #{tpu_custom_call.1} parent=1 // pred_check_branch
      %75 = sbr.rel (0) target = $region21
    $region20: #{tpu_custom_call.1} parent=1 // pred_region
      %s77 = ssub.s32 256, 256
      %78 = vsyncadd [#allocation4], %s77
      %s80 = sshll.u32 [#allocation7], 4
      %s81 = int_to_ptr.vmem [resolvable:$true] %s80
      %83 = dma.vmem_to_hbm [thread:$0]  %s81, 256, %s2, [#allocation4]
    $region21: #{tpu_custom_call.1} parent=1 // pred_fallthru
      _
    // Predicated region
    $region22: #{tpu_custom_call.1} parent=1 // pred_check
      _
    $region23: #{tpu_custom_call.1} parent=1 // pred_check_branch
      %85 = sbr.rel (0) target = $region25
    $region24: #{tpu_custom_call.1} parent=1 // pred_region
      %86 = dma.done [#allocation4], 256
    $region25: #{tpu_custom_call.1} parent=1 // pred_fallthru
      _
    %87 = vsyncpa [#allocation3], 1
    %88 = vsyncpa [#allocation6], 1
    %89 = vsyncpa [#allocation4], 1

</llo_original>
